<compile_context>
chip_gen: v7x
topology: tpu7x:2x2x1
jax: 0.10.0
libtpu: 0.0.40
codegen_flags: <defaults>
</compile_context>

<pallas_src>
import functools
import math

import jax
import jax.numpy as jnp
from jax.experimental import pallas as pl
from jax.experimental.pallas import tpu as pltpu


def _cdiv(a: int, b: int) -> int:
    return -(-a // b)


def _device_kind() -> str:
    try:
        return jax.devices()[0].device_kind.lower()
    except Exception:
        return ""


def _vmem_capacity_bytes() -> int:
    """Per-TensorCore VMEM capacity (64 MiB on v7x, 128 MiB on v5e/v6e)."""
    try:
        cap = int(pltpu.get_tpu_info().vmem_capacity_bytes)
        if cap > 0:
            return cap
    except Exception:
        pass
    kind = _device_kind()
    if "v7" in kind or "7x" in kind:
        return 64 * 1024 * 1024
    return 128 * 1024 * 1024


def _num_tensorcores() -> int:
    """TensorCores per chip a 'parallel' grid axis can be sharded across."""
    kind = _device_kind()
    if any(tag in kind for tag in ("v7", "7x", "v4", "v5p")):
        return 2
    return 1


def _pick_tile_rows(rows_eff: int, d_eff: int, dtype, vmem_cap: int,
                    n_cores: int) -> int:
    """Row-tile size: big enough to amortize per-step overhead, small enough to
    fit the VMEM pipeline buffers and keep a few blocks in flight."""
    itemsize = jnp.dtype(dtype).itemsize
    sublane = {1: 32, 2: 16}.get(itemsize, 8)  # native packed sublane tile

    if rows_eff <= sublane:
        return rows_eff  # full-dim block (allowed even if not 8-aligned)

    # Pipeline footprint per block row: 2x double-buffered input + 2x output
    # blocks; elementwise temporaries live in vregs, so only add one fp32
    # staging block when the input itself is sub-32-bit.
    row_bytes = d_eff * itemsize
    per_row = 4 * row_bytes
    if itemsize < 4:
        per_row += 4 * d_eff
    budget = vmem_cap // 2  # headroom for compiler-internal scratch

    # Input-block byte target (past the measured step-overhead knee); smaller
    # ceiling on v7x's 64 MiB VMEM.
    target_block_bytes = (2 << 20) if vmem_cap <= (64 << 20) else (4 << 20)
    tile = min(budget // per_row,
               max(sublane, target_block_bytes // max(1, row_bytes)))
    tile = max(sublane, (tile // sublane) * sublane)

    # Keep enough grid steps for DMA/compute/writeback overlap; on dual-TC
    # chips ask for >= 4 blocks so each core still gets a pipelined pair.
    min_steps = 4 if n_cores >= 2 else 3
    if rows_eff > min_steps * sublane:
        cap_tile = max(sublane, (rows_eff // min_steps) // sublane * sublane)
        tile = min(tile, cap_tile)

    if tile >= rows_eff:
        return rows_eff

    # Prefer an even block count on dual-TensorCore chips (balanced halves).
    steps = _cdiv(rows_eff, tile)
    if n_cores >= 2 and steps > 1 and steps % 2 == 1:
        alt = _cdiv(_cdiv(rows_eff, steps + 1), sublane) * sublane
        if sublane <= alt < rows_eff and _cdiv(rows_eff, alt) % 2 == 0:
            tile = alt
    return int(tile)


def _rmsnorm_kernel(x_ref, w_ref, o_ref, *, eps: float, inv_d: float):
    # x_ref: (tile_rows, d_eff), w_ref: (1, d_eff) fp32, o_ref: (tile_rows, d_eff)
    x = x_ref[...].astype(jnp.float32)
    ms = jnp.sum(x * x, axis=-1, keepdims=True) * inv_d   # XLU lane reduce
    inv = jax.lax.rsqrt(ms + eps)                          # EUP, (tile_rows, 1)
    o_ref[...] = (x * inv * w_ref[...]).astype(o_ref.dtype)


def _rmsnorm_grouped_kernel(x_ref, w_ref, seg_ref, segt_ref, o_ref, *,
                            eps: float, inv_d: float):
    # Small-d_model path: `groups` logical rows are folded side by side along
    # the lane axis (block width exactly 128). The per-group mean-square is a
    # segmented reduction done on the otherwise-idle MXU with a 0/1 segment
    # matrix; the reciprocal root is broadcast back to lanes via seg.T.
    x = x_ref[...].astype(jnp.float32)                     # (tile_rows, d_eff)
    xx = x * x
    ss = jnp.dot(xx, seg_ref[...],
                 preferred_element_type=jnp.float32)       # (tile_rows, groups)
    inv = jax.lax.rsqrt(ss * inv_d + eps)
    inv_full = jnp.dot(inv, segt_ref[...],
                       preferred_element_type=jnp.float32)  # (tile_rows, d_eff)
    o_ref[...] = (x * inv_full * w_ref[...]).astype(o_ref.dtype)


def rmsnorm(x: jax.Array, weight: jax.Array, eps: float = 1e-5) -> jax.Array:
    """RMSNorm over the last axis of x, matching the PyTorch module semantics."""
    orig_shape = x.shape
    d_model = orig_shape[-1]
    assert weight.shape == (d_model,)

    n_rows = math.prod(orig_shape[:-1]) if len(orig_shape) > 1 else 1
    x2d = x.reshape(n_rows, d_model)

    groups, pad_rows, pad_lanes = 1, 0, 0
    if d_model < 128:
        if 128 % d_model == 0:
            # Fold groups of consecutive rows along the lane axis so every
            # load/store is lane-dense (width exactly 128).
            groups = 128 // d_model
            rem = n_rows % groups
            if rem:
                pad_rows = groups - rem  # zero rows; dropped after the call
                x2d = jnp.concatenate(
                    [x2d, jnp.zeros((pad_rows, d_model), x2d.dtype)], axis=0)
        else:
            # Lane-pad to 128 so stores stay unmasked; padded lanes carry zero
            # gain and contribute zero to the mean-square (divisor stays d_model).
            pad_lanes = 128 - d_model
            x2d = jnp.pad(x2d, ((0, 0), (0, pad_lanes)))

    d_lane = d_model + pad_lanes
    d_eff = groups * d_lane
    rows_tot = n_rows + pad_rows
    rows_eff = rows_tot // groups
    x_eff = x2d.reshape(rows_eff, d_eff)

    # Pre-cast / pre-pack the gain once (stays VMEM-resident across the grid).
    w32 = weight.astype(jnp.float32)
    if pad_lanes:
        w32 = jnp.pad(w32, (0, pad_lanes))
    w_eff = jnp.tile(w32, groups).reshape(1, d_eff)

    vmem_cap = _vmem_capacity_bytes()
    n_cores = _num_tensorcores()
    tile_rows = _pick_tile_rows(rows_eff, d_eff, x.dtype, vmem_cap, n_cores)
    grid = (pl.cdiv(rows_eff, tile_rows),)

    # vmem_limit from the actual pipeline footprint (+ slack for compiler scratch).
    itemsize = jnp.dtype(x.dtype).itemsize
    blk_bytes = tile_rows * d_eff * itemsize
    footprint = 4 * blk_bytes + 2 * d_eff * 4       # 2x in + 2x out + 2x gain
    if itemsize < 4:
        footprint += tile_rows * d_eff * 4          # fp32 staging copy
    if groups > 1:
        footprint += 4 * d_eff * groups * 4         # seg + seg.T (double-buffered)
    vmem_limit = int(min(vmem_cap, footprint + (16 << 20)))

    in_specs = [
        pl.BlockSpec((tile_rows, d_eff), lambda i: (i, 0)),
        pl.BlockSpec((1, d_eff), lambda i: (0, 0)),
    ]
    args = [x_eff, w_eff]

    if groups > 1:
        lane_group = jnp.arange(d_eff, dtype=jnp.int32) // d_model
        seg = (lane_group[:, None] ==
               jnp.arange(groups, dtype=jnp.int32)[None, :]).astype(jnp.float32)
        in_specs += [
            pl.BlockSpec((d_eff, groups), lambda i: (0, 0)),
            pl.BlockSpec((groups, d_eff), lambda i: (0, 0)),
        ]
        args += [seg, seg.T]
        kernel = functools.partial(_rmsnorm_grouped_kernel, eps=eps,
                                   inv_d=1.0 / d_model)
    else:
        kernel = functools.partial(_rmsnorm_kernel, eps=eps, inv_d=1.0 / d_model)

    # TODO(synk): for extreme d_model where even one sublane-tile row block
    # overflows VMEM, a second (lane-tiled) grid axis with an in-kernel partial
    # reduction would be needed; not required for typical transformer widths.
    out = pl.pallas_call(
        kernel,
        out_shape=jax.ShapeDtypeStruct((rows_eff, d_eff), x.dtype),
        grid_spec=pltpu.PrefetchScalarGridSpec(
            num_scalar_prefetch=0,
            grid=grid,
            in_specs=in_specs,
            out_specs=pl.BlockSpec((tile_rows, d_eff), lambda i: (i, 0)),
        ),
        compiler_params=pltpu.CompilerParams(
            dimension_semantics=("parallel",),
            vmem_limit_bytes=vmem_limit),
    )(*args)

    out2d = out.reshape(rows_tot, d_lane)
    if pad_lanes:
        out2d = out2d[:, :d_model]
    if pad_rows:
        out2d = out2d[:n_rows]
    return out2d.reshape(orig_shape)


def _ref_rmsnorm(x, w, eps):
    # Plain-JAX reference matching the PyTorch forward.
    x32 = x.astype(jnp.float32)
    rms = jnp.sqrt(jnp.mean(x32 * x32, axis=-1, keepdims=True) + eps)
    return ((x32 / rms) * w.astype(jnp.float32)).astype(x.dtype)


if __name__ == "__main__":
    key = jax.random.PRNGKey(0)
    eps = 1e-5
    k1, k2, k3, k4, k5, k6, k7 = jax.random.split(key, 7)

    # 1) Shapes implied by the module: batch=2, seq=8, d_model=32 (lane-fold,
    #    MXU segmented-reduce path). Loose tolerance covers MXU f32 pass
    #    precision differences across generations.
    batch, seq, d_model = 2, 8, 32
    x = jax.random.normal(k1, (batch, seq, d_model), dtype=jnp.float32)
    w = jnp.ones((d_model,), dtype=jnp.float32)  # gain initialized to 1
    out = jax.block_until_ready(rmsnorm(x, w, eps=eps))
    ref = _ref_rmsnorm(x, w, eps)
    assert out.shape == x.shape and out.dtype == x.dtype
    assert jnp.allclose(out, ref, atol=2e-2, rtol=2e-2)

    # 2) Lane-dense path (d_model multiple of 128), non-trivial gain, ragged
    #    last row block (rows not a multiple of the tile).
    d2 = 256
    x2 = jax.random.normal(k2, (4, 13, d2), dtype=jnp.float32)
    w2 = 1.0 + 0.1 * jax.random.normal(k3, (d2,), dtype=jnp.float32)
    out2 = jax.block_until_ready(rmsnorm(x2, w2, eps=eps))
    ref2 = _ref_rmsnorm(x2, w2, eps)
    assert out2.shape == x2.shape and out2.dtype == x2.dtype
    assert jnp.allclose(out2, ref2, atol=1e-5, rtol=1e-5)

    # 3) Lane-fold path where rows are NOT divisible by the fold factor
    #    (row zero-padding in the wrapper, sliced out afterwards).
    x3 = jax.random.normal(k4, (3, 5, 32), dtype=jnp.float32)
    w3 = 1.0 + 0.1 * jax.random.normal(k5, (32,), dtype=jnp.float32)
    out3 = jax.block_until_ready(rmsnorm(x3, w3, eps=eps))
    ref3 = _ref_rmsnorm(x3, w3, eps)
    assert out3.shape == x3.shape and out3.dtype == x3.dtype
    assert jnp.allclose(out3, ref3, atol=2e-2, rtol=2e-2)

    # 4) d_model < 128 with 128 % d_model != 0: lane padding keeps stores dense.
    x4 = jax.random.normal(k6, (2, 7, 48), dtype=jnp.float32)
    w4 = 1.0 + 0.1 * jax.random.normal(k7, (48,), dtype=jnp.float32)
    out4 = jax.block_until_ready(rmsnorm(x4, w4, eps=eps))
    ref4 = _ref_rmsnorm(x4, w4, eps)
    assert out4.shape == x4.shape and out4.dtype == x4.dtype
    assert jnp.allclose(out4, ref4, atol=1e-5, rtol=1e-5)

    print("KERNEL_OK")
</pallas_src>

<mosaic_0001>
module attributes {stable_mosaic.version = 11 : i64} {
  func.func @_rmsnorm_grouped_kernel(%arg0: i32, %arg1: memref<4x128xf32, #tpu.memory_space<vmem>>, %arg2: memref<1x128xf32, #tpu.memory_space<vmem>>, %arg3: memref<128x4xf32, #tpu.memory_space<vmem>>, %arg4: memref<4x128xf32, #tpu.memory_space<vmem>>, %arg5: memref<4x128xf32, #tpu.memory_space<vmem>>) attributes {dimension_semantics = [#tpu.dimension_semantics<parallel>], iteration_bounds = array<i64: 1>, scalar_prefetch = 0 : i64, scratch_operands = 0 : i64, tpu.core_type = #tpu.core_type<tc>, window_params = [{transform_indices = @transform_0, window_bounds = array<i64: 4, 128>}, {pipeline_mode = #tpu.pipeline_mode<synchronous>, transform_indices = @transform_1, window_bounds = array<i64: 1, 128>}, {pipeline_mode = #tpu.pipeline_mode<synchronous>, transform_indices = @transform_2, window_bounds = array<i64: 128, 4>}, {pipeline_mode = #tpu.pipeline_mode<synchronous>, transform_indices = @transform_3, window_bounds = array<i64: 4, 128>}, {transform_indices = @transform_4, window_bounds = array<i64: 4, 128>}]} {
    %c0 = arith.constant 0 : index
    %c0_0 = arith.constant 0 : index
    %0 = vector.load %arg1[%c0, %c0_0] : memref<4x128xf32, #tpu.memory_space<vmem>>, vector<4x128xf32>
    %1 = arith.mulf %0, %0 : vector<4x128xf32>
    %c0_1 = arith.constant 0 : index
    %c0_2 = arith.constant 0 : index
    %2 = vector.load %arg3[%c0_1, %c0_2] : memref<128x4xf32, #tpu.memory_space<vmem>>, vector<128x4xf32>
    %cst = arith.constant dense<0.000000e+00> : vector<4x4xf32>
    %3 = tpu.matmul %1, %2, %cst {dimension_numbers = #tpu.dot_dimension_numbers<[1], [0], [0], [1], [0, 0, 1, 1], [], []>} : vector<4x128xf32>, vector<128x4xf32>, vector<4x4xf32> -> vector<4x4xf32>
    %cst_3 = arith.constant 3.125000e-02 : f32
    %4 = vector.broadcast %cst_3 : f32 to vector<4x4xf32>
    %5 = arith.mulf %3, %4 : vector<4x4xf32>
    %cst_4 = arith.constant 9.99999974E-6 : f32
    %6 = vector.broadcast %cst_4 : f32 to vector<4x4xf32>
    %7 = arith.addf %5, %6 : vector<4x4xf32>
    %8 = math.rsqrt %7 : vector<4x4xf32>
    %c0_5 = arith.constant 0 : index
    %c0_6 = arith.constant 0 : index
    %9 = vector.load %arg4[%c0_5, %c0_6] : memref<4x128xf32, #tpu.memory_space<vmem>>, vector<4x128xf32>
    %cst_7 = arith.constant dense<0.000000e+00> : vector<4x128xf32>
    %10 = tpu.matmul %8, %9, %cst_7 {dimension_numbers = #tpu.dot_dimension_numbers<[1], [0], [0], [1], [0, 0, 1, 1], [], []>} : vector<4x4xf32>, vector<4x128xf32>, vector<4x128xf32> -> vector<4x128xf32>
    %11 = arith.mulf %0, %10 : vector<4x128xf32>
    %c0_8 = arith.constant 0 : index
    %c0_9 = arith.constant 0 : index
    %12 = vector.load %arg2[%c0_8, %c0_9] : memref<1x128xf32, #tpu.memory_space<vmem>>, vector<1x128xf32>
    %13 = vector.broadcast %12 : vector<1x128xf32> to vector<4x128xf32>
    %14 = arith.mulf %11, %13 : vector<4x128xf32>
    %c0_10 = arith.constant 0 : index
    %c0_11 = arith.constant 0 : index
    %15 = vector.load %arg5[%c0_10, %c0_11] : memref<4x128xf32, #tpu.memory_space<vmem>>, vector<4x128xf32>
    tpu.vector_store %arg5[%c0_10, %c0_11], %14 {strides = array<i32>} : memref<4x128xf32, #tpu.memory_space<vmem>>, vector<4x128xf32>,
    return
  }
  func.func @transform_0(%arg0: i32) -> (i32, i32) {
    %c0_i32 = arith.constant 0 : i32
    %c0_i32_0 = arith.constant 0 : i32
    return %arg0, %c0_i32 : i32, i32
  }
  func.func @transform_1(%arg0: i32) -> (i32, i32) {
    %c0_i32 = arith.constant 0 : i32
    %c0_i32_0 = arith.constant 0 : i32
    %c0_i32_1 = arith.constant 0 : i32
    return %c0_i32, %c0_i32_0 : i32, i32
  }
  func.func @transform_2(%arg0: i32) -> (i32, i32) {
    %c0_i32 = arith.constant 0 : i32
    %c0_i32_0 = arith.constant 0 : i32
    %c0_i32_1 = arith.constant 0 : i32
    return %c0_i32, %c0_i32_0 : i32, i32
  }
  func.func @transform_3(%arg0: i32) -> (i32, i32) {
    %c0_i32 = arith.constant 0 : i32
    %c0_i32_0 = arith.constant 0 : i32
    %c0_i32_1 = arith.constant 0 : i32
    return %c0_i32, %c0_i32_0 : i32, i32
  }
  func.func @transform_4(%arg0: i32) -> (i32, i32) {
    %c0_i32 = arith.constant 0 : i32
    %c0_i32_0 = arith.constant 0 : i32
    return %arg0, %c0_i32 : i32, i32
  }
}

</mosaic_0001>

<llo_original>
// kernel: tpu_custom_call.1
$region0: #{tpu_custom_call.1}
  #allocation0 [shape = 'u32[]', space=smem, size = 0x4, offset = 0x4, fixed_abs, tag = 'smem constant byte address 0x4 - core index']
  #allocation1 [shape = 'u32[144,128]{1,0:T(1,128)}', space=vmem, size = 0x12000, scoped, tag = 'internal scratch']
  %s0 = inlined_call_operand.vmem [shape: f32[4,128], index: 0, kind: input, shape index: {}]
  %s1 = inlined_call_operand.vmem [shape: f32[1,128], index: 1, kind: input, shape index: {}]
  %s2 = inlined_call_operand.vmem [shape: f32[128,4], index: 2, kind: input, shape index: {}]
  %s3 = inlined_call_operand.vmem [shape: f32[4,128], index: 3, kind: input, shape index: {}]
  %s4 = inlined_call_operand.hbm [shape: f32[4,128], index: 4, kind: output, shape index: {}]
  %s5 = sld [smem:[#allocation0]]
  $region26: #{tpu_custom_call.1} parent=0
    _
  %s7 = ssub.s32 1, %s5
  %s8 = scalar_select 0, %s7, %s5
  $region1: #{tpu_custom_call.1} parent=0
    #allocation2 [shape = 'u8[2048]{0}', space=vmem, size = 0x800, scoped, tag = 'output window, operand 0, single buffered']
    #allocation3 [shape = 's32[1]{0}', space=sflag, size = 0x4, scoped, tag = 'scoped memory for tpu_custom_call.1']
    %9 = vsyncpa [#allocation3], 0
    // Predicated region
    $region2: #{tpu_custom_call.1} parent=1 // pred_check
      _
    $region3: #{tpu_custom_call.1} parent=1 // pred_check_branch
      %11 = sbr.rel (0) target = $region5
    $region4: #{tpu_custom_call.1} parent=1 // pred_region
      _
    $region5: #{tpu_custom_call.1} parent=1 // pred_fallthru
      _
    // Predicated region
    $region6: #{tpu_custom_call.1} parent=1 // pred_check
      _
    $region7: #{tpu_custom_call.1} parent=1 // pred_check_branch
      %13 = sbr.rel (0) target = $region9
    $region8: #{tpu_custom_call.1} parent=1 // pred_region
      _
    $region9: #{tpu_custom_call.1} parent=1 // pred_fallthru
      _
    // Predicated region
    $region10: #{tpu_custom_call.1} parent=1 // pred_check
      _
    $region11: #{tpu_custom_call.1} parent=1 // pred_check_branch
      %15 = sbr.rel (0) target = $region13
    $region12: #{tpu_custom_call.1} parent=1 // pred_region
      _
    $region13: #{tpu_custom_call.1} parent=1 // pred_fallthru
      _
    // Predicated region
    $region14: #{tpu_custom_call.1} parent=1 // pred_check
      _
    $region15: #{tpu_custom_call.1} parent=1 // pred_check_branch
      %17 = sbr.rel (0) target = $region17
    $region16: #{tpu_custom_call.1} parent=1 // pred_region
      _
    $region17: #{tpu_custom_call.1} parent=1 // pred_fallthru
      _
    %v18 = vld [vmem:[%s0] sm:$0xf]
    %v19 = vmul.f32 %v18, %v18
    %v20 = vld [vmem:[%s2] sm:$0xff]
    %v21 = vld [vmem:[%s2 + $0x8] sm:$0xff]
    %v22 = vld [vmem:[%s2 + $0x10] sm:$0xff]
    %v23 = vld [vmem:[%s2 + $0x18] sm:$0xff]
    %v24 = vld [vmem:[%s2 + $0x20] sm:$0xff]
    %v25 = vld [vmem:[%s2 + $0x28] sm:$0xff]
    %v26 = vld [vmem:[%s2 + $0x30] sm:$0xff]
    %v27 = vld [vmem:[%s2 + $0x38] sm:$0xff]
    %v28 = vld [vmem:[%s2 + $0x40] sm:$0xff]
    %v29 = vld [vmem:[%s2 + $0x48] sm:$0xff]
    %v30 = vld [vmem:[%s2 + $0x50] sm:$0xff]
    %v31 = vld [vmem:[%s2 + $0x58] sm:$0xff]
    %v32 = vld [vmem:[%s2 + $0x60] sm:$0xff]
    %v33 = vld [vmem:[%s2 + $0x68] sm:$0xff]
    %v34 = vld [vmem:[%s2 + $0x70] sm:$0xff]
    %v35 = vld [vmem:[%s2 + $0x78] sm:$0xff]
    %36 = vmatprep.subr.mxu0 0.0
    %37 = vmatpush1.msra.mxu0 %v20
    %38 = vmatprep.subr.mxu0 0.0
    %39 = vmatpush1.msra.mxu0 %v21
    %40 = vmatprep.subr.mxu0 0.0
    %41 = vmatpush1.msra.mxu0 %v22
    %42 = vmatprep.subr.mxu0 0.0
    %43 = vmatpush1.msra.mxu0 %v23
    %44 = vmatprep.subr.mxu0 0.0
    %45 = vmatpush1.msra.mxu0 %v24
    %46 = vmatprep.subr.mxu0 0.0
    %47 = vmatpush1.msra.mxu0 %v25
    %48 = vmatprep.subr.mxu0 0.0
    %49 = vmatpush1.msra.mxu0 %v26
    %50 = vmatprep.subr.mxu0 0.0
    %51 = vmatpush1.msra.mxu0 %v27
    %52 = vmatprep.subr.mxu0 0.0
    %53 = vmatpush1.msra.mxu0 %v28
    %54 = vmatprep.subr.mxu0 0.0
    %55 = vmatpush1.msra.mxu0 %v29
    %56 = vmatprep.subr.mxu0 0.0
    %57 = vmatpush1.msra.mxu0 %v30
    %58 = vmatprep.subr.mxu0 0.0
    %59 = vmatpush1.msra.mxu0 %v31
    %60 = vmatprep.subr.mxu0 0.0
    %61 = vmatpush1.msra.mxu0 %v32
    %62 = vmatprep.subr.mxu0 0.0
    %63 = vmatpush1.msra.mxu0 %v33
    %64 = vmatprep.subr.mxu0 0.0
    %65 = vmatpush1.msra.mxu0 %v34
    %66 = vmatprep.subr.mxu0 0.0
    %67 = vmatpush1.msra.mxu0 %v35
    %68 = vmatprep.subr.mxu0 0.0
    %69 = vmatpush1.msra.mxu0 0.0
    %70 = vmatprep.subr.mxu0 0.0
    %71 = vmatpush1.msra.mxu0 0.0
    %72 = vmatprep.subr.mxu0 0.0
    %73 = vmatpush1.msra.mxu0 0.0
    %74 = vmatprep.subr.mxu0 0.0
    %75 = vmatpush1.msra.mxu0 0.0
    %76 = vmatprep.subr.mxu0 0.0
    %77 = vmatpush1.msra.mxu0 0.0
    %78 = vmatprep.subr.mxu0 0.0
    %79 = vmatpush1.msra.mxu0 0.0
    %80 = vmatprep.subr.mxu0 0.0
    %81 = vmatpush1.msra.mxu0 0.0
    %82 = vmatprep.subr.mxu0 0.0
    %83 = vmatpush1.msra.mxu0 0.0
    %84 = vmatprep.subr.mxu0 0.0
    %85 = vmatpush1.msra.mxu0 0.0
    %86 = vmatprep.subr.mxu0 0.0
    %87 = vmatpush1.msra.mxu0 0.0
    %88 = vmatprep.subr.mxu0 0.0
    %89 = vmatpush1.msra.mxu0 0.0
    %90 = vmatprep.subr.mxu0 0.0
    %91 = vmatpush1.msra.mxu0 0.0
    %92 = vmatprep.subr.mxu0 0.0
    %93 = vmatpush1.msra.mxu0 0.0
    %94 = vmatprep.subr.mxu0 0.0
    %95 = vmatpush1.msra.mxu0 0.0
    %96 = vmatprep.subr.mxu0 0.0
    %97 = vmatpush1.msra.mxu0 0.0
    %98 = vmatprep.subr.mxu0 0.0
    %99 = vmatpush1.msra.mxu0 0.0
    %100 = vmatprep.mubr.f32.mxu0 0.0
    %101 = vmatmul.mubr.f32.gmra.mrb[0].mxu0 %v19
    %v102 = vpop.f32.mrb[0].mxu0
    %v103 = vadd.f32 0.0, %v102
    %v104 = vpop.f32.mrb[0].mxu0
    %105 = vdwg.mxu0
    %v106 = vmul.f32 %v103, 0.03125
    %v107 = vadd.f32 %v106, 1e-05
    %v108 = vrsqrt.pop %v107
    %v109 = vld [vmem:[%s3] sm:$0xf]
    %vm110 = vcmask 31744
    %v112 = vsel %vm110, %v108, 0
    %vm114 = vcmask 1043456
    %v116 = vsel %vm114, %v109, 0
    %118 = vmatprep.subr.mxu0 0.0
    %119 = vmatpush1.msra.mxu0 %v116
    %120 = vmatprep.subr.mxu0 0.0
    %121 = vmatpush1.msra.mxu0 0.0
    %122 = vmatprep.subr.mxu0 0.0
    %123 = vmatpush1.msra.mxu0 0.0
    %124 = vmatprep.subr.mxu0 0.0
    %125 = vmatpush1.msra.mxu0 0.0
    %126 = vmatprep.subr.mxu0 0.0
    %127 = vmatpush1.msra.mxu0 0.0
    %128 = vmatprep.subr.mxu0 0.0
    %129 = vmatpush1.msra.mxu0 0.0
    %130 = vmatprep.subr.mxu0 0.0
    %131 = vmatpush1.msra.mxu0 0.0
    %132 = vmatprep.subr.mxu0 0.0
    %133 = vmatpush1.msra.mxu0 0.0
    %134 = vmatprep.subr.mxu0 0.0
    %135 = vmatpush1.msra.mxu0 0.0
    %136 = vmatprep.subr.mxu0 0.0
    %137 = vmatpush1.msra.mxu0 0.0
    %138 = vmatprep.subr.mxu0 0.0
    %139 = vmatpush1.msra.mxu0 0.0
    %140 = vmatprep.subr.mxu0 0.0
    %141 = vmatpush1.msra.mxu0 0.0
    %142 = vmatprep.subr.mxu0 0.0
    %143 = vmatpush1.msra.mxu0 0.0
    %144 = vmatprep.subr.mxu0 0.0
    %145 = vmatpush1.msra.mxu0 0.0
    %146 = vmatprep.subr.mxu0 0.0
    %147 = vmatpush1.msra.mxu0 0.0
    %148 = vmatprep.subr.mxu0 0.0
    %149 = vmatpush1.msra.mxu0 0.0
    %150 = vmatprep.subr.mxu0 0.0
    %151 = vmatpush1.msra.mxu0 0.0
    %152 = vmatprep.subr.mxu0 0.0
    %153 = vmatpush1.msra.mxu0 0.0
    %154 = vmatprep.subr.mxu0 0.0
    %155 = vmatpush1.msra.mxu0 0.0
    %156 = vmatprep.subr.mxu0 0.0
    %157 = vmatpush1.msra.mxu0 0.0
    %158 = vmatprep.subr.mxu0 0.0
    %159 = vmatpush1.msra.mxu0 0.0
    %160 = vmatprep.subr.mxu0 0.0
    %161 = vmatpush1.msra.mxu0 0.0
    %162 = vmatprep.subr.mxu0 0.0
    %163 = vmatpush1.msra.mxu0 0.0
    %164 = vmatprep.subr.mxu0 0.0
    %165 = vmatpush1.msra.mxu0 0.0
    %166 = vmatprep.subr.mxu0 0.0
    %167 = vmatpush1.msra.mxu0 0.0
    %168 = vmatprep.subr.mxu0 0.0
    %169 = vmatpush1.msra.mxu0 0.0
    %170 = vmatprep.subr.mxu0 0.0
    %171 = vmatpush1.msra.mxu0 0.0
    %172 = vmatprep.subr.mxu0 0.0
    %173 = vmatpush1.msra.mxu0 0.0
    %174 = vmatprep.subr.mxu0 0.0
    %175 = vmatpush1.msra.mxu0 0.0
    %176 = vmatprep.subr.mxu0 0.0
    %177 = vmatpush1.msra.mxu0 0.0
    %178 = vmatprep.subr.mxu0 0.0
    %179 = vmatpush1.msra.mxu0 0.0
    %180 = vmatprep.subr.mxu0 0.0
    %181 = vmatpush1.msra.mxu0 0.0
    %182 = vmatprep.mubr.f32.mxu0 0.0
    %183 = vmatmul.mubr.f32.gmra.mrb[0].mxu0 %v112
    %v184 = vpop.f32.mrb[0].mxu0
    %v185 = vadd.f32 0.0, %v184
    %v186 = vpop.f32.mrb[0].mxu0
    %187 = vdwg.mxu0
    %v188 = vmul.f32 %v18, %v185
    %v189 = vld [vmem:[%s1] sm:$0x1]
    %v191 = vlaneseq
    %v192 = vshrl.u32 %v191, 7
    %v193 = vsub.s32 0, %v192
    %v194 = vrot.slane %v189, %v193
    %v196 = vmul.f32 %v188, %v194
    %197 = vst [vmem:[#allocation2] sm:$0xf] %v196
    // Predicated region
    $region18: #{tpu_custom_call.1} parent=1 // pred_check
      _
    $region19: #{tpu_custom_call.1} parent=1 // pred_check_branch
      %199 = sbr.rel (0) target = $region21
    $region20: #{tpu_custom_call.1} parent=1 // pred_region
      %s201 = ssub.s32 64, 64
      %202 = vsyncadd [#allocation3], %s201
      %s204 = sshll.u32 [#allocation2], 4
      %s205 = int_to_ptr.vmem [resolvable:$true] %s204
      %207 = dma.vmem_to_hbm [thread:$0]  %s205, 64, %s4, [#allocation3]
    $region21: #{tpu_custom_call.1} parent=1 // pred_fallthru
      _
    // Predicated region
    $region22: #{tpu_custom_call.1} parent=1 // pred_check
      _
    $region23: #{tpu_custom_call.1} parent=1 // pred_check_branch
      %209 = sbr.rel (0) target = $region25
    $region24: #{tpu_custom_call.1} parent=1 // pred_region
      %210 = dma.done [#allocation3], 64
    $region25: #{tpu_custom_call.1} parent=1 // pred_fallthru
      _
    %211 = vsyncpa [#allocation3], 1

</llo_original>
